<compile_context>
chip_gen: v7x
topology: tpu7x:2x2x1
jax: 0.10.0
libtpu: 0.0.40
codegen_flags: <defaults>
</compile_context>

<pallas_src>
import functools

import jax
import jax.numpy as jnp
from jax.experimental import pallas as pl
from jax.experimental.pallas import tpu as pltpu

LANE = 128                  # f32 lanes per vreg row
PTS_PER_ROW = LANE // 2     # 64 points per flat row (2 features interleaved on lanes)
SUBLANE = 8
MAX_TR = 8192               # rows per tile: 4 MiB x-block + 2 MiB y-block per step
SMALL_BATCH = 1024          # below this, a single fused XLA op beats pallas_call cost


def _round_up(x, m):
    return ((x + m - 1) // m) * m


def affine_deinterleave_kernel(b_ref, m_ref, x_ref, o_ref):
    """o = x @ M + b  (one MXU matmul fuses deinterleave + 2-feature dot).

    x_ref: (TR, 128) f32  -- natural row-major view of x[(B,2)]; each row holds
                             64 points with their 2 features interleaved on lanes.
    m_ref: (128, 64) f32  -- M[2j, j] = W0, M[2j+1, j] = W1 (VMEM-resident).
    b_ref: (1,) f32 SMEM  -- collapsed bias.
    o_ref: (TR, 64) f32   -- y for this block's 64*TR points, already in point order.
    """
    o_ref[...] = (
        jnp.dot(x_ref[...], m_ref[...], preferred_element_type=jnp.float32)
        + b_ref[0]
    )


def collapse_params(params):
    """Fold the three Linear layers into (W, bias, M, b).

    Params are static between forward calls -- hoist/cached by the caller or
    fused under jit; this is a handful of tiny ops either way.
    Only valid because there is no activation between the layers.
    """
    w1, b1 = params["w1"], params["b1"]
    w2, b2 = params["w2"], params["b2"]
    w3, b3 = params["w3"], params["b3"]
    W = ((w1 @ w2) @ w3).astype(jnp.float32)                    # (2, 1)
    bias = (((b1 @ w2) + b2) @ w3 + b3).astype(jnp.float32)     # (1, 1)
    # Deinterleave/dot matrix: column j picks lanes 2j (feature 0) and 2j+1 (feature 1).
    row = jnp.arange(LANE)[:, None]
    col = jnp.arange(PTS_PER_ROW)[None, :]
    M = jnp.where(row == 2 * col, W[0, 0],
                  jnp.where(row == 2 * col + 1, W[1, 0], 0.0)).astype(jnp.float32)
    b = bias.reshape(1)
    return W, bias, M, b


def _pallas_forward(x, M, b):
    B = x.shape[0]
    rows = pl.cdiv(B, PTS_PER_ROW)          # flat rows of 128 f32 needed for 2*B values
    n_tiles = pl.cdiv(rows, MAX_TR)
    if n_tiles == 1 and rows >= 2 * SUBLANE:
        n_tiles = 2                         # keep both v7x TensorCores busy (megacore)
    TR = _round_up(pl.cdiv(rows, n_tiles), SUBLANE)
    padded_rows = TR * n_tiles
    padded_B = padded_rows * PTS_PER_ROW

    x_flat = x.reshape(-1).astype(jnp.float32)   # free: x is (B, 2) row-major
    if padded_B != B:
        # Pad only to the tile granule (<= ~8*n_tiles rows + 63 pts); zero-copy when aligned.
        x_flat = jnp.zeros((2 * padded_B,), jnp.float32).at[: 2 * B].set(x_flat)
    x_rows = x_flat.reshape(padded_rows, LANE)

    out = pl.pallas_call(
        affine_deinterleave_kernel,
        out_shape=jax.ShapeDtypeStruct((padded_rows, PTS_PER_ROW), jnp.float32),
        grid=(n_tiles,),
        in_specs=[
            pl.BlockSpec(memory_space=pltpu.MemorySpace.SMEM),      # collapsed bias
            pl.BlockSpec((LANE, PTS_PER_ROW), lambda i: (0, 0)),    # M: fetched once
            pl.BlockSpec((TR, LANE), lambda i: (i, 0)),             # x: streamed tiles
        ],
        out_specs=pl.BlockSpec((TR, PTS_PER_ROW), lambda i: (i, 0)),
        compiler_params=pltpu.CompilerParams(
            dimension_semantics=("parallel",),          # shards across v7x TCs
            vmem_limit_bytes=40 * 1024 * 1024,          # 2x(4 MiB in) + 2x(4 MiB out) + slack
        ),
    )(b, M, x_rows)

    y = out.reshape(-1)
    if padded_B != B:
        y = y[:B]       # padded tail equals the bias (NOT zero) -- keep this slice
    return y.reshape(B, 1)


def circle_model_v1(x, params, *, use_pallas=None):
    """Forward pass of CircleModelV1: layer_3(layer_2(layer_1(x))), x: (B, 2) f32."""
    B = x.shape[0]
    W, bias, M, b = collapse_params(params)
    if use_pallas is None:
        use_pallas = B >= SMALL_BATCH
    if not use_pallas:
        # Tiny batches: pallas_call fixed cost dominates; one fused XLA op instead.
        return x.astype(jnp.float32) @ W + bias
    return _pallas_forward(x, M, b)


def init_params(key):
    """Deterministic init matching PyTorch nn.Linear (weights stored as [in, out])."""
    k1, k2, k3, k4, k5, k6 = jax.random.split(key, 6)

    def uniform(k, shape, fan_in):
        bound = 1.0 / jnp.sqrt(fan_in)
        return jax.random.uniform(k, shape, jnp.float32, -bound, bound)

    return {
        "w1": uniform(k1, (2, 10), 2.0),
        "b1": uniform(k2, (1, 10), 2.0),
        "w2": uniform(k3, (10, 10), 10.0),
        "b2": uniform(k4, (1, 10), 10.0),
        "w3": uniform(k5, (10, 1), 10.0),
        "b3": uniform(k6, (1, 1), 10.0),
    }


def reference_forward(x, p):
    h1 = x @ p["w1"] + p["b1"]
    h2 = h1 @ p["w2"] + p["b2"]
    return h2 @ p["w3"] + p["b3"]


if __name__ == "__main__":
    key = jax.random.PRNGKey(0)
    pkey, xkey = jax.random.split(key)
    params = init_params(pkey)

    fwd = jax.jit(functools.partial(circle_model_v1, use_pallas=True))

    # 1) Tile-aligned batch: zero-copy reshape path through the Pallas kernel.
    B = 2048
    x = jax.random.normal(xkey, (B, 2), jnp.float32)
    out = jax.block_until_ready(fwd(x, params))
    ref = reference_forward(x, params)
    assert out.shape == (B, 1), out.shape
    # Tolerance covers the layer-collapse reassociation + MXU f32 (multi-pass) matmul.
    assert jnp.allclose(out, ref, atol=1e-4, rtol=1e-4), float(jnp.max(jnp.abs(out - ref)))

    # 2) Unaligned batch (the course's 1000-sample circles dataset): granule pad + tail slice.
    x2 = jax.random.normal(jax.random.PRNGKey(1), (1000, 2), jnp.float32)
    out2 = jax.block_until_ready(fwd(x2, params))
    ref2 = reference_forward(x2, params)
    assert out2.shape == (1000, 1), out2.shape
    assert jnp.allclose(out2, ref2, atol=1e-4, rtol=1e-4)

    # 3) Tiny batch: auto-dispatch takes the fused-XLA fallback (no pallas_call).
    x3 = jax.random.normal(jax.random.PRNGKey(2), (8, 2), jnp.float32)
    out3 = jax.block_until_ready(circle_model_v1(x3, params))
    assert out3.shape == (8, 1), out3.shape
    assert jnp.allclose(out3, reference_forward(x3, params), atol=1e-4, rtol=1e-4)

    print("KERNEL_OK")
</pallas_src>

<mosaic_0001>
module attributes {stable_mosaic.version = 11 : i64} {
  func.func @affine_deinterleave_kernel(%arg0: i32, %arg1: memref<1xf32, #tpu.memory_space<smem>>, %arg2: memref<128x64xf32, #tpu.memory_space<vmem>>, %arg3: memref<16x128xf32, #tpu.memory_space<vmem>>, %arg4: memref<16x64xf32, #tpu.memory_space<vmem>>) attributes {dimension_semantics = [#tpu.dimension_semantics<parallel>], iteration_bounds = array<i64: 2>, scalar_prefetch = 0 : i64, scratch_operands = 0 : i64, tpu.core_type = #tpu.core_type<tc>, window_params = [{transform_indices = @transform_0, window_bounds = array<i64: 1>}, {pipeline_mode = #tpu.pipeline_mode<synchronous>, transform_indices = @transform_1, window_bounds = array<i64: 128, 64>}, {transform_indices = @transform_2, window_bounds = array<i64: 16, 128>}, {transform_indices = @transform_3, window_bounds = array<i64: 16, 64>}]} {
    %c0 = arith.constant 0 : index
    %c0_0 = arith.constant 0 : index
    %0 = vector.load %arg3[%c0, %c0_0] : memref<16x128xf32, #tpu.memory_space<vmem>>, vector<16x128xf32>
    %c0_1 = arith.constant 0 : index
    %c0_2 = arith.constant 0 : index
    %1 = vector.load %arg2[%c0_1, %c0_2] : memref<128x64xf32, #tpu.memory_space<vmem>>, vector<128x64xf32>
    %cst = arith.constant dense<0.000000e+00> : vector<16x64xf32>
    %2 = tpu.matmul %0, %1, %cst {dimension_numbers = #tpu.dot_dimension_numbers<[1], [0], [0], [1], [0, 0, 1, 1], [], []>} : vector<16x128xf32>, vector<128x64xf32>, vector<16x64xf32> -> vector<16x64xf32>
    %c0_3 = arith.constant 0 : index
    %3 = memref.load %arg1[%c0_3] : memref<1xf32, #tpu.memory_space<smem>>
    %4 = vector.broadcast %3 : f32 to vector<16x64xf32>
    %5 = arith.addf %2, %4 : vector<16x64xf32>
    %c0_4 = arith.constant 0 : index
    %c0_5 = arith.constant 0 : index
    %6 = vector.load %arg4[%c0_4, %c0_5] : memref<16x64xf32, #tpu.memory_space<vmem>>, vector<16x64xf32>
    tpu.vector_store %arg4[%c0_4, %c0_5], %5 {strides = array<i32>} : memref<16x64xf32, #tpu.memory_space<vmem>>, vector<16x64xf32>,
    return
  }
  func.func @transform_0(%arg0: i32) -> i32 {
    %c0_i32 = arith.constant 0 : i32
    %c0_i32_0 = arith.constant 0 : i32
    return %c0_i32 : i32
  }
  func.func @transform_1(%arg0: i32) -> (i32, i32) {
    %c0_i32 = arith.constant 0 : i32
    %c0_i32_0 = arith.constant 0 : i32
    %c0_i32_1 = arith.constant 0 : i32
    return %c0_i32, %c0_i32_0 : i32, i32
  }
  func.func @transform_2(%arg0: i32) -> (i32, i32) {
    %c0_i32 = arith.constant 0 : i32
    %c0_i32_0 = arith.constant 0 : i32
    return %arg0, %c0_i32 : i32, i32
  }
  func.func @transform_3(%arg0: i32) -> (i32, i32) {
    %c0_i32 = arith.constant 0 : i32
    %c0_i32_0 = arith.constant 0 : i32
    return %arg0, %c0_i32 : i32, i32
  }
}

</mosaic_0001>

<llo_original>
// kernel: circle_model_v1.1
$region0: #{circle_model_v1.1}
  #allocation0 [shape = 'u32[]', space=smem, size = 0x4, offset = 0x4, fixed_abs, tag = 'smem constant byte address 0x4 - core index']
  #allocation1 [shape = 'u32[144,128]{1,0:T(1,128)}', space=vmem, size = 0x12000, scoped, tag = 'internal scratch']
  #allocation2 [shape = 'f32[1]{0:T(128)S(6)}', space=smem, size = 0x200, scoped, tag = 'scoped memory for circle_model_v1.1']
  %s0 = inlined_call_operand.<no memory space> [shape: f32[1], index: 0, kind: input, shape index: {}]
  %s1 = inlined_call_operand.vmem [shape: f32[128,64], index: 1, kind: input, shape index: {}]
  %s2 = inlined_call_operand.vmem [shape: f32[32,128], index: 2, kind: input, shape index: {}]
  %s3 = inlined_call_operand.vmem [shape: f32[32,64], index: 3, kind: output, shape index: {}]
  %s4 = sld [smem:[#allocation0]]
  $region45: #{circle_model_v1.1} parent=0
    _
  %s6 = ssub.s32 1, %s4
  %s7 = scalar_select 0, %s6, %s4
  %8 = sst [smem:[#allocation2]] %s0
  loop: start=0, step=1, limit=4
  $region2: #{circle_model_v1.1} parent=0 // loop_pre_header
    _
  $region3: #{circle_model_v1.1} parent=0 // loop_header
    %s10 = sphi 0, %s14
    %p11 = scmp.ge.s32.totalorder %s10, 4
    %s18 = sphi 0, %s18
    %s20 = sphi 0, %s18
    %s21 = sphi 0, %s20
    %s35 = sphi 0, %s21
    %s39 = sphi 0, %s39
    %s41 = sphi 0, %s39
    %s42 = sphi 0, %s41
    %s56 = sphi 0, %s42
    %s62 = sphi 0, %s64
    %s65 = sphi 0, %s62
    %s66 = sphi 0, %s65
    %s82 = sphi 0, %s66
    %s88 = sphi 0, %s90
    %s91 = sphi 0, %s88
    %s92 = sphi 0, %s91
    %s108 = sphi 0, %s92
  $region4: #{circle_model_v1.1} parent=0 // loop_header_branch
    %13 = sbr.rel (%p11) target = $region8
  $region5: #{circle_model_v1.1} parent=0 // loop_body
    %s15 = ssub.s32 %s10, 1
    %s16 = ssub.s32 %s10, 2
    %s17 = sadd.s32 %s10, 1
    %s19 = sadd.s32 %s18, 1
    %p22 = scmp.eq.s32.totalorder %s10, 1
    %p23 = scmp.ne.s32.totalorder %s18, %s20
    %p24 = scmp.eq.s32.totalorder %s10, 0
    %p25 = por %p23, %p24
    %p26 = scmp.ne.s32.totalorder %s18, %s20
    %p27 = scmp.eq.s32.totalorder %s15, 1
    %p28 = por %p26, %p27
    %p29 = scmp.ne.s32.totalorder %s20, %s21
    %p30 = scmp.eq.s32.totalorder %s15, 0
    %p31 = por %p29, %p30
    %p32 = scmp.ne.s32.totalorder %s20, %s21
    %p33 = scmp.eq.s32.totalorder %s16, 1
    %p34 = por %p32, %p33
    %p36 = scmp.ne.s32.totalorder %s21, %s35
    %p37 = scmp.eq.s32.totalorder %s16, 0
    %p38 = por %p36, %p37
    %s40 = sadd.s32 %s39, 1
    %p43 = scmp.eq.s32.totalorder %s10, 1
    %p44 = scmp.ne.s32.totalorder %s39, %s41
    %p45 = scmp.eq.s32.totalorder %s10, 0
    %p46 = por %p44, %p45
    %p47 = scmp.ne.s32.totalorder %s39, %s41
    %p48 = scmp.eq.s32.totalorder %s15, 1
    %p49 = por %p47, %p48
    %p50 = scmp.ne.s32.totalorder %s41, %s42
    %p51 = scmp.eq.s32.totalorder %s15, 0
    %p52 = por %p50, %p51
    %p53 = scmp.ne.s32.totalorder %s41, %s42
    %p54 = scmp.eq.s32.totalorder %s16, 1
    %p55 = por %p53, %p54
    %p57 = scmp.ne.s32.totalorder %s42, %s56
    %p58 = scmp.eq.s32.totalorder %s16, 0
    %p59 = por %p57, %p58
    %s60 = ssub.s32 %s10, %s17
    %p61 = scmp.eq.s32.totalorder %s60, 0
    %s63 = sadd.s32 %s62, 1
    %s64 = scalar_select %p61, %s62, %s63
    %p67 = pneg %p61
    %p68 = scmp.eq.s32.totalorder %s10, 1
    %p69 = por %p67, %p68
    %p70 = scmp.ne.s32.totalorder %s62, %s65
    %p71 = scmp.eq.s32.totalorder %s10, 0
    %p72 = por %p70, %p71
    %p73 = scmp.ne.s32.totalorder %s62, %s65
    %p74 = scmp.eq.s32.totalorder %s15, 1
    %p75 = por %p73, %p74
    %p76 = scmp.ne.s32.totalorder %s65, %s66
    %p77 = scmp.eq.s32.totalorder %s15, 0
    %p78 = por %p76, %p77
    %p79 = scmp.ne.s32.totalorder %s65, %s66
    %p80 = scmp.eq.s32.totalorder %s16, 1
    %p81 = por %p79, %p80
    %p83 = scmp.ne.s32.totalorder %s66, %s82
    %p84 = scmp.eq.s32.totalorder %s16, 0
    %p85 = por %p83, %p84
    %s86 = ssub.s32 %s10, %s17
    %p87 = scmp.eq.s32.totalorder %s86, 0
    %s89 = sadd.s32 %s88, 1
    %s90 = scalar_select %p87, %s88, %s89
    %p93 = pneg %p87
    %p94 = scmp.eq.s32.totalorder %s10, 1
    %p95 = por %p93, %p94
    %p96 = scmp.ne.s32.totalorder %s88, %s91
    %p97 = scmp.eq.s32.totalorder %s10, 0
    %p98 = por %p96, %p97
    %p99 = scmp.ne.s32.totalorder %s88, %s91
    %p100 = scmp.eq.s32.totalorder %s15, 1
    %p101 = por %p99, %p100
    %p102 = scmp.ne.s32.totalorder %s91, %s92
    %p103 = scmp.eq.s32.totalorder %s15, 0
    %p104 = por %p102, %p103
    %p105 = scmp.ne.s32.totalorder %s91, %s92
    %p106 = scmp.eq.s32.totalorder %s16, 1
    %p107 = por %p105, %p106
    %p109 = scmp.ne.s32.totalorder %s92, %s108
    %p110 = scmp.eq.s32.totalorder %s16, 0
    %p111 = por %p109, %p110
    %p112 = scmp.le.s32.totalorder 1, %s10
    %p113 = scmp.lt.s32.totalorder %s10, 3
    %p114 = pnand %p112, %p113
    %p115 = pneg %p114
    // Predicated region
    $region9: #{circle_model_v1.1} parent=5 // pred_check
      _
    $region10: #{circle_model_v1.1} parent=5 // pred_check_branch
      %117 = sbr.rel (%p114) target = $region12
    $region11: #{circle_model_v1.1} parent=5 // pred_region
      %s118 = ssub.s32 %s10, 1
      // Predicated region
      $region13: #{circle_model_v1.1} parent=11 // pred_check
        %p119 = pneg %p31
      $region14: #{circle_model_v1.1} parent=11 // pred_check_branch
        %121 = sbr.rel (%p119) target = $region16
      $region15: #{circle_model_v1.1} parent=11 // pred_region
        _
      $region16: #{circle_model_v1.1} parent=11 // pred_fallthru
        _
      // Predicated region
      $region17: #{circle_model_v1.1} parent=11 // pred_check
        %p122 = pneg %p52
      $region18: #{circle_model_v1.1} parent=11 // pred_check_branch
        %124 = sbr.rel (%p122) target = $region20
      $region19: #{circle_model_v1.1} parent=11 // pred_region
        _
      $region20: #{circle_model_v1.1} parent=11 // pred_fallthru
        _
    $region12: #{circle_model_v1.1} parent=5 // pred_fallthru
      _
    %p125 = scmp.lt.s32.totalorder %s10, 2
    // Predicated region
    $region21: #{circle_model_v1.1} parent=5 // pred_check
      %p126 = pneg %p125
    $region22: #{circle_model_v1.1} parent=5 // pred_check_branch
      %128 = sbr.rel (%p126) target = $region24
    $region23: #{circle_model_v1.1} parent=5 // pred_region
      // Predicated region
      $region25: #{circle_model_v1.1} parent=23 // pred_check
        %p129 = pneg %p72
      $region26: #{circle_model_v1.1} parent=23 // pred_check_branch
        %131 = sbr.rel (%p129) target = $region28
      $region27: #{circle_model_v1.1} parent=23 // pred_region
        %s132 = smul.u32 2, %s10
        %p133 = scmp.lt.s32.totalorder %s132, 3
        %s134 = scalar_select %p133, %s132, 3
        %s135 = smul.addr %s134, 8
        %s136 = scalar_lea.vmem %s2, %s135
        %s137 = smul.u32 2, %s10
      $region28: #{circle_model_v1.1} parent=23 // pred_fallthru
        _
    $region24: #{circle_model_v1.1} parent=5 // pred_fallthru
      _
    %p138 = scmp.le.s32.totalorder 1, %s10
    %p139 = scmp.lt.s32.totalorder %s10, 3
    %p140 = pnand %p138, %p139
    %p141 = pneg %p140
    // Predicated region
    $region29: #{circle_model_v1.1} parent=5 // pred_check
      _
    $region30: #{circle_model_v1.1} parent=5 // pred_check_branch
      %143 = sbr.rel (%p140) target = $region32
    $region31: #{circle_model_v1.1} parent=5 // pred_region
      %s144 = ssub.s32 %s10, 1
      %p145 = pneg %p31
      %p146 = pneg %p28
      %p147 = pneg %p52
      %p148 = pneg %p49
      %s149 = smul.u32 2, %s15
      %p150 = scmp.lt.s32.totalorder %s149, 3
      %s151 = scalar_select %p150, %s149, 3
      %s152 = smul.addr %s151, 8
      %s153 = scalar_lea.vmem %s2, %s152
      %p154 = pneg %p78
      %p155 = pneg %p75
      %p156 = pneg %p104
      %p157 = pneg %p101
      %s158 = smul.u32 2, %s15
      %p159 = scmp.lt.s32.totalorder %s158, 3
      %s160 = scalar_select %p159, %s158, 3
      %s161 = smul.addr %s160, 8
      %s162 = scalar_lea.vmem %s3, %s161
      %s163 = smul.u32 2, %s15
      %p164 = scmp.lt.s32.totalorder %s163, 3
      %s165 = scalar_select %p164, %s163, 3
      %s166 = smul.addr %s165, 8
      %s167 = scalar_lea.vmem %s2, %s166
      %s168 = smul.u32 2, %s15
      %s169 = smul.u32 2, %s15
      %p170 = scmp.lt.s32.totalorder %s169, 3
      %s171 = scalar_select %p170, %s169, 3
      %s172 = smul.addr %s171, 8
      %s173 = scalar_lea.vmem %s3, %s172
      %s174 = smul.u32 2, %s15
      %v175 = vld [vmem:[%s167] sm:$0xff]
      %v176 = vld [vmem:[%s167 + $0x8] sm:$0xff]
      %v177 = vld [vmem:[%s1] sm:$0xff]
      %v178 = vld [vmem:[%s1 + $0x8] sm:$0xff]
      %v179 = vld [vmem:[%s1 + $0x10] sm:$0xff]
      %v180 = vld [vmem:[%s1 + $0x18] sm:$0xff]
      %v181 = vld [vmem:[%s1 + $0x20] sm:$0xff]
      %v182 = vld [vmem:[%s1 + $0x28] sm:$0xff]
      %v183 = vld [vmem:[%s1 + $0x30] sm:$0xff]
      %v184 = vld [vmem:[%s1 + $0x38] sm:$0xff]
      %v185 = vld [vmem:[%s1 + $0x40] sm:$0xff]
      %v186 = vld [vmem:[%s1 + $0x48] sm:$0xff]
      %v187 = vld [vmem:[%s1 + $0x50] sm:$0xff]
      %v188 = vld [vmem:[%s1 + $0x58] sm:$0xff]
      %v189 = vld [vmem:[%s1 + $0x60] sm:$0xff]
      %v190 = vld [vmem:[%s1 + $0x68] sm:$0xff]
      %v191 = vld [vmem:[%s1 + $0x70] sm:$0xff]
      %v192 = vld [vmem:[%s1 + $0x78] sm:$0xff]
      %s193 = sld [smem:[#allocation2]]
      %v194 = vstv %s193
      %195 = vmatprep.subr.mxu0 0.0
      %196 = vmatpush1.msra.mxu0 %v177
      %197 = vmatprep.subr.mxu0 0.0
      %198 = vmatpush1.msra.mxu0 %v178
      %199 = vmatprep.subr.mxu0 0.0
      %200 = vmatpush1.msra.mxu0 %v179
      %201 = vmatprep.subr.mxu0 0.0
      %202 = vmatpush1.msra.mxu0 %v180
      %203 = vmatprep.subr.mxu0 0.0
      %204 = vmatpush1.msra.mxu0 %v181
      %205 = vmatprep.subr.mxu0 0.0
      %206 = vmatpush1.msra.mxu0 %v182
      %207 = vmatprep.subr.mxu0 0.0
      %208 = vmatpush1.msra.mxu0 %v183
      %209 = vmatprep.subr.mxu0 0.0
      %210 = vmatpush1.msra.mxu0 %v184
      %211 = vmatprep.subr.mxu0 0.0
      %212 = vmatpush1.msra.mxu0 %v185
      %213 = vmatprep.subr.mxu0 0.0
      %214 = vmatpush1.msra.mxu0 %v186
      %215 = vmatprep.subr.mxu0 0.0
      %216 = vmatpush1.msra.mxu0 %v187
      %217 = vmatprep.subr.mxu0 0.0
      %218 = vmatpush1.msra.mxu0 %v188
      %219 = vmatprep.subr.mxu0 0.0
      %220 = vmatpush1.msra.mxu0 %v189
      %221 = vmatprep.subr.mxu0 0.0
      %222 = vmatpush1.msra.mxu0 %v190
      %223 = vmatprep.subr.mxu0 0.0
      %224 = vmatpush1.msra.mxu0 %v191
      %225 = vmatprep.subr.mxu0 0.0
      %226 = vmatpush1.msra.mxu0 %v192
      %227 = vmatprep.subr.mxu0 0.0
      %228 = vmatpush1.msra.mxu0 0.0
      %229 = vmatprep.subr.mxu0 0.0
      %230 = vmatpush1.msra.mxu0 0.0
      %231 = vmatprep.subr.mxu0 0.0
      %232 = vmatpush1.msra.mxu0 0.0
      %233 = vmatprep.subr.mxu0 0.0
      %234 = vmatpush1.msra.mxu0 0.0
      %235 = vmatprep.subr.mxu0 0.0
      %236 = vmatpush1.msra.mxu0 0.0
      %237 = vmatprep.subr.mxu0 0.0
      %238 = vmatpush1.msra.mxu0 0.0
      %239 = vmatprep.subr.mxu0 0.0
      %240 = vmatpush1.msra.mxu0 0.0
      %241 = vmatprep.subr.mxu0 0.0
      %242 = vmatpush1.msra.mxu0 0.0
      %243 = vmatprep.subr.mxu0 0.0
      %244 = vmatpush1.msra.mxu0 0.0
      %245 = vmatprep.subr.mxu0 0.0
      %246 = vmatpush1.msra.mxu0 0.0
      %247 = vmatprep.subr.mxu0 0.0
      %248 = vmatpush1.msra.mxu0 0.0
      %249 = vmatprep.subr.mxu0 0.0
      %250 = vmatpush1.msra.mxu0 0.0
      %251 = vmatprep.subr.mxu0 0.0
      %252 = vmatpush1.msra.mxu0 0.0
      %253 = vmatprep.subr.mxu0 0.0
      %254 = vmatpush1.msra.mxu0 0.0
      %255 = vmatprep.subr.mxu0 0.0
      %256 = vmatpush1.msra.mxu0 0.0
      %257 = vmatprep.subr.mxu0 0.0
      %258 = vmatpush1.msra.mxu0 0.0
      %259 = vmatprep.mubr.f32.mxu0 0.0
      %260 = vmatmul.mubr.f32.gmra.mrb[0].mxu0 %v175
      %v261 = vpop.f32.mrb[0].mxu0
      %v262 = vadd.f32 %v194, %v261
      %v263 = vpop.f32.mrb[0].mxu0
      %264 = vmatprep.mubr.f32.mxu0 0.0
      %265 = vmatmul.mubr.f32.gmra.mrb[0].mxu0 %v176
      %v266 = vpop.f32.mrb[0].mxu0
      %v267 = vadd.f32 %v194, %v266
      %v268 = vpop.f32.mrb[0].mxu0
      %269 = vdwg.mxu0
      %vm270 = vcmask 523264
      %271 = vst.msk [vmem:[%s173] sm:$0xff] %vm270, %v262
      %272 = vst.msk [vmem:[%s173 + $0x8] sm:$0xff] %vm270, %v267
      %s273 = smul.u32 2, %s15
      %p274 = scmp.lt.s32.totalorder %s273, 3
      %s275 = scalar_select %p274, %s273, 3
      %s276 = smul.addr %s275, 8
      %s277 = scalar_lea.vmem %s3, %s276
      // Predicated region
      $region33: #{circle_model_v1.1} parent=31 // pred_check
        %p278 = pneg %p101
      $region34: #{circle_model_v1.1} parent=31 // pred_check_branch
        %280 = sbr.rel (%p278) target = $region36
      $region35: #{circle_model_v1.1} parent=31 // pred_region
        %s281 = smul.u32 2, %s15
      $region36: #{circle_model_v1.1} parent=31 // pred_fallthru
        _
    $region32: #{circle_model_v1.1} parent=5 // pred_fallthru
      _
    %p282 = scmp.le.s32.totalorder 2, %s10
    // Predicated region
    $region37: #{circle_model_v1.1} parent=5 // pred_check
      %p283 = pneg %p282
    $region38: #{circle_model_v1.1} parent=5 // pred_check_branch
      %285 = sbr.rel (%p283) target = $region40
    $region39: #{circle_model_v1.1} parent=5 // pred_region
      %s286 = ssub.s32 %s10, 2
      // Predicated region
      $region41: #{circle_model_v1.1} parent=39 // pred_check
        %p287 = pneg %p107
      $region42: #{circle_model_v1.1} parent=39 // pred_check_branch
        %289 = sbr.rel (%p287) target = $region44
      $region43: #{circle_model_v1.1} parent=39 // pred_region
        %s290 = smul.u32 2, %s16
        %p291 = scmp.lt.s32.totalorder %s290, 3
        %s292 = scalar_select %p291, %s290, 3
        %s293 = smul.addr %s292, 8
        %s294 = scalar_lea.vmem %s3, %s293
      $region44: #{circle_model_v1.1} parent=39 // pred_fallthru
        _
    $region40: #{circle_model_v1.1} parent=5 // pred_fallthru
      _
  $region6: #{circle_model_v1.1} parent=0 // loop_footer
    %s14 = sadd.s32 1, %s10
  $region7: #{circle_model_v1.1} parent=0 // loop_footer_branch
    %9 = sbr.rel target = $region3
  $region8: #{circle_model_v1.1} parent=0 // loop_exit
    _

</llo_original>
